<compile_context>
chip_gen: v5e
topology: v5e:2x2
jax: 0.10.0
libtpu: 0.0.40
codegen_flags: <defaults>
</compile_context>

<pallas_src>
import jax
import jax.numpy as jnp
from jax.experimental import pallas as pl
from jax.experimental.pallas import tpu as pltpu  # noqa: F401  (kept for TPU-specific tweaks)

# ------------------------- problem sizes (small, deterministic) -------------------------
B = 2          # batch
SEQ = 6        # b  (original sequence length fed to the module)
IN_C = 8       # in_c
OUT_C = 16     # out_c
MAX_LEN = 16   # max_length

N_TAPS = 6             # union of conv receptive fields over an (even, odd) time pair
L_PAD = 2 * SEQ + 4    # padded time extent per batch actually touched by the kernel

# Guards (see review "correctness_concerns"):
#  - SEQ <= MAX_LEN//2 - 1 lets us drop conv3's appended-zero-column mask: that zero
#    only affects pooled row MAX_LEN//2 - 1, which is sliced away by [:SEQ].
#    (If SEQ == MAX_LEN//2 the mask becomes load-bearing and must be reinstated.)
#  - largest conv reach is 2 (k=5, pad=2); the +/-2 tap window below assumes exactly that.
assert MAX_LEN % 2 == 0
assert SEQ <= MAX_LEN // 2 - 1, "conv3 zero-column mask removal requires SEQ <= MAX_LEN//2 - 1"


# ------------------------------------ Pallas kernel -------------------------------------
def _mcc_kernel(xp_ref, w_ref, b_ref, o_ref):
    """Single invocation, whole problem.

    xp_ref : (B * L_PAD, IN_C)  input, per-batch time axis zero-padded (2 left, rest right)
    w_ref  : (N_TAPS*IN_C, 7*OUT_C) = [W_even(:, :48) | W_odd(:, 48:96) | W_linT(:, 96:112)]
    b_ref  : (1, 4*OUT_C)           = [b1 | b2 | b3 | b_lin]  (f32)
    o_ref  : (B*SEQ, OUT_C)
    """
    w = w_ref[...]                                  # (48, 112), compute dtype (f32 or bf16)
    bias = b_ref[...]                               # (1, 64), f32

    # --- im2col: E[b*SEQ + j, o*IN_C:(o+1)*IN_C] = xp[b, 2j + o, :]  (static strided loads)
    rows = []
    for b in range(B):
        taps = [xp_ref[pl.ds(b * L_PAD + o, SEQ, stride=2), :] for o in range(N_TAPS)]
        rows.append(jnp.concatenate(taps, axis=-1))           # (SEQ, N_TAPS*IN_C)
    e = jnp.concatenate(rows, axis=0) if B > 1 else rows[0]   # (B*SEQ, 48)
    e = e.astype(w.dtype)

    w_even = w[:, 0:3 * OUT_C]
    w_odd = w[:, 3 * OUT_C:6 * OUT_C]
    w_lin = w[:, 6 * OUT_C:7 * OUT_C]

    # conv outputs at even / odd time positions for all three branches at once
    even = jnp.dot(e, w_even, preferred_element_type=jnp.float32)   # (B*SEQ, 48)
    odd = jnp.dot(e, w_odd, preferred_element_type=jnp.float32)     # (B*SEQ, 48)

    # MaxPool1d(2) + bias + ReLU, fused in-register:
    #   max(relu(y_even + b), relu(y_odd + b)) == relu(max(y_even, y_odd) + b)
    pooled = jnp.maximum(jnp.maximum(even, odd) + bias[:, :3 * OUT_C], 0.0)

    # final Linear(3*OUT_C -> OUT_C)
    out = jnp.dot(pooled.astype(w.dtype), w_lin, preferred_element_type=jnp.float32)
    o_ref[...] = (out + bias[:, 3 * OUT_C:]).astype(o_ref.dtype)


# ---------------------------------------- wrapper ---------------------------------------
def pack_params(params, compute_dtype=jnp.float32):
    """Pack all weights/biases into two contiguous slabs (one-time setup, 2 DMAs per call).

    Tap layout: E row (b, j) holds xp[b, 2j + o] for o = 0..5, i.e. x[b, 2j + o - 2].
      conv output at even time t=2j : conv1 taps (1,2,3), conv2 (0..4), conv3 (2,3)
      conv output at odd  time t=2j+1: conv1 taps (2,3,4), conv2 (1..5), conv3 (3,4)
    """
    w1t = jnp.transpose(params["w1"], (2, 1, 0))   # (3, IN_C, OUT_C)
    w2t = jnp.transpose(params["w2"], (2, 1, 0))   # (5, IN_C, OUT_C)
    w3t = jnp.transpose(params["w3"], (2, 1, 0))   # (2, IN_C, OUT_C)

    def place(wt, taps):
        w = jnp.zeros((N_TAPS, IN_C, OUT_C), jnp.float32)
        for k, o in enumerate(taps):
            w = w.at[o].set(wt[k])
        return w.reshape(N_TAPS * IN_C, OUT_C)

    w_even = jnp.concatenate(
        [place(w1t, (1, 2, 3)), place(w2t, (0, 1, 2, 3, 4)), place(w3t, (2, 3))], axis=1)
    w_odd = jnp.concatenate(
        [place(w1t, (2, 3, 4)), place(w2t, (1, 2, 3, 4, 5)), place(w3t, (3, 4))], axis=1)
    w_lin = params["wl"].T                                           # (3*OUT_C, OUT_C)

    w_slab = jnp.concatenate([w_even, w_odd, w_lin], axis=1)         # (48, 112)
    b_slab = jnp.concatenate(
        [params["b1"], params["b2"], params["b3"], params["bl"]]).reshape(1, 4 * OUT_C)
    return w_slab.astype(compute_dtype), b_slab.astype(jnp.float32)


@jax.jit
def multi_channel_cnn(x, w_slab, b_slab):
    """x: (B, SEQ, IN_C) f32 -> (B, SEQ, OUT_C) f32."""
    bsz, seq, in_c = x.shape
    assert (bsz, seq, in_c) == (B, SEQ, IN_C)

    # single fused pad: 2 zeros on the left (conv reach) and enough zeros on the right so
    # every static tap slice is in-bounds; all touched positions >= SEQ are zero in the
    # original module too (max_length padding / conv boundary padding).
    xp = jnp.pad(x, ((0, 0), (2, L_PAD - 2 - SEQ), (0, 0)))          # (B, L_PAD, IN_C)
    xp = xp.reshape(B * L_PAD, IN_C)

    out = pl.pallas_call(
        _mcc_kernel,
        out_shape=jax.ShapeDtypeStruct((B * SEQ, OUT_C), jnp.float32),
        in_specs=[
            pl.BlockSpec((B * L_PAD, IN_C), lambda: (0, 0)),
            pl.BlockSpec(w_slab.shape, lambda: (0, 0)),
            pl.BlockSpec(b_slab.shape, lambda: (0, 0)),
        ],
        out_specs=pl.BlockSpec((B * SEQ, OUT_C), lambda: (0, 0)),
    )(xp, w_slab, b_slab)
    return out.reshape(B, SEQ, OUT_C)


# ----------------------------- pure-JAX reference (for checking) ------------------------
def reference(x, params):
    b, seq, _ = x.shape
    xpad = jnp.pad(x, ((0, 0), (0, MAX_LEN - seq), (0, 0)))          # (B, MAX_LEN, IN_C)
    xc = jnp.transpose(xpad, (0, 2, 1))                              # (B, IN_C, MAX_LEN)

    def conv(inp, w, bias, pad):
        y = jax.lax.conv_general_dilated(
            inp, w, window_strides=(1,), padding=[(pad, pad)],
            dimension_numbers=("NCH", "OIH", "NCH"))
        return jax.nn.relu(y + bias[None, :, None])

    y1 = conv(xc, params["w1"], params["b1"], 1)
    y2 = conv(xc, params["w2"], params["b2"], 2)
    y3 = conv(xc, params["w3"], params["b3"], 0)
    y3 = jnp.pad(y3, ((0, 0), (0, 0), (0, 1)))

    pool = lambda y: jnp.max(y.reshape(y.shape[0], y.shape[1], -1, 2), axis=-1)
    cat = jnp.concatenate([pool(y1), pool(y2), pool(y3)], axis=1)    # (B, 3*OUT_C, MAX_LEN//2)
    feat = jnp.transpose(cat, (0, 2, 1))[:, :seq, :]
    return feat @ params["wl"].T + params["bl"]


# ------------------------------------------ main ----------------------------------------
if __name__ == "__main__":
    key = jax.random.PRNGKey(0)
    ks = jax.random.split(key, 10)
    params = {
        "w1": jax.random.normal(ks[0], (OUT_C, IN_C, 3), jnp.float32) * 0.1,
        "b1": jax.random.normal(ks[1], (OUT_C,), jnp.float32) * 0.1,
        "w2": jax.random.normal(ks[2], (OUT_C, IN_C, 5), jnp.float32) * 0.1,
        "b2": jax.random.normal(ks[3], (OUT_C,), jnp.float32) * 0.1,
        "w3": jax.random.normal(ks[4], (OUT_C, IN_C, 2), jnp.float32) * 0.1,
        "b3": jax.random.normal(ks[5], (OUT_C,), jnp.float32) * 0.1,
        "wl": jax.random.normal(ks[6], (OUT_C, 3 * OUT_C), jnp.float32) * 0.1,
        "bl": jax.random.normal(ks[7], (OUT_C,), jnp.float32) * 0.1,
    }
    x = jax.random.normal(ks[8], (B, SEQ, IN_C), jnp.float32)

    ref = jax.block_until_ready(reference(x, params))

    # f32 MXU operands: bit-faithful to the PyTorch module's numerics.
    w32, b32 = pack_params(params, jnp.float32)
    out32 = jax.block_until_ready(multi_channel_cnn(x, w32, b32))
    assert out32.shape == (B, SEQ, OUT_C), out32.shape
    assert jnp.allclose(out32, ref, atol=1e-3, rtol=1e-3), float(jnp.max(jnp.abs(out32 - ref)))

    # bf16 MXU operands / f32 accumulation (MXU-native on v5e/v6e/v7x; VPU work stays f32).
    wbf, bbf = pack_params(params, jnp.bfloat16)
    outbf = jax.block_until_ready(multi_channel_cnn(x, wbf, bbf))
    assert outbf.shape == (B, SEQ, OUT_C), outbf.shape
    assert jnp.allclose(outbf, ref, atol=5e-2, rtol=5e-2), float(jnp.max(jnp.abs(outbf - ref)))

    print("KERNEL_OK")
</pallas_src>

<mosaic_0001>
module attributes {stable_mosaic.version = 11 : i64} {
  func.func @_mcc_kernel(%arg0: memref<32x8xf32, #tpu.memory_space<vmem>>, %arg1: memref<48x112xf32, #tpu.memory_space<vmem>>, %arg2: memref<1x64xf32, #tpu.memory_space<vmem>>, %arg3: memref<12x16xf32, #tpu.memory_space<vmem>>) attributes {dimension_semantics = [], scalar_prefetch = 0 : i64, scratch_operands = 0 : i64, tpu.core_type = #tpu.core_type<tc>} {
    %c0 = arith.constant 0 : index
    %c0_0 = arith.constant 0 : index
    %0 = vector.load %arg1[%c0, %c0_0] : memref<48x112xf32, #tpu.memory_space<vmem>>, vector<48x112xf32>
    %c0_1 = arith.constant 0 : index
    %c0_2 = arith.constant 0 : index
    %1 = vector.load %arg2[%c0_1, %c0_2] : memref<1x64xf32, #tpu.memory_space<vmem>>, vector<1x64xf32>
    %c0_3 = arith.constant 0 : index
    %c0_4 = arith.constant 0 : index
    %2 = tpu.strided_load %arg0[%c0_3, %c0_4] {strides = array<i32: 2, 1>} : memref<32x8xf32, #tpu.memory_space<vmem>>, vector<6x8xf32>
    %c1 = arith.constant 1 : index
    %c0_5 = arith.constant 0 : index
    %3 = tpu.strided_load %arg0[%c1, %c0_5] {strides = array<i32: 2, 1>} : memref<32x8xf32, #tpu.memory_space<vmem>>, vector<6x8xf32>
    %c2 = arith.constant 2 : index
    %c0_6 = arith.constant 0 : index
    %4 = tpu.strided_load %arg0[%c2, %c0_6] {strides = array<i32: 2, 1>} : memref<32x8xf32, #tpu.memory_space<vmem>>, vector<6x8xf32>
    %c3 = arith.constant 3 : index
    %c0_7 = arith.constant 0 : index
    %5 = tpu.strided_load %arg0[%c3, %c0_7] {strides = array<i32: 2, 1>} : memref<32x8xf32, #tpu.memory_space<vmem>>, vector<6x8xf32>
    %c4 = arith.constant 4 : index
    %c0_8 = arith.constant 0 : index
    %6 = tpu.strided_load %arg0[%c4, %c0_8] {strides = array<i32: 2, 1>} : memref<32x8xf32, #tpu.memory_space<vmem>>, vector<6x8xf32>
    %c5 = arith.constant 5 : index
    %c0_9 = arith.constant 0 : index
    %7 = tpu.strided_load %arg0[%c5, %c0_9] {strides = array<i32: 2, 1>} : memref<32x8xf32, #tpu.memory_space<vmem>>, vector<6x8xf32>
    %8 = tpu.concatenate %2, %3, %4, %5, %6, %7 in 1 : vector<6x8xf32>, vector<6x8xf32>, vector<6x8xf32>, vector<6x8xf32>, vector<6x8xf32>, vector<6x8xf32> -> vector<6x48xf32>
    %c16 = arith.constant 16 : index
    %c0_10 = arith.constant 0 : index
    %9 = tpu.strided_load %arg0[%c16, %c0_10] {strides = array<i32: 2, 1>} : memref<32x8xf32, #tpu.memory_space<vmem>>, vector<6x8xf32>
    %c17 = arith.constant 17 : index
    %c0_11 = arith.constant 0 : index
    %10 = tpu.strided_load %arg0[%c17, %c0_11] {strides = array<i32: 2, 1>} : memref<32x8xf32, #tpu.memory_space<vmem>>, vector<6x8xf32>
    %c18 = arith.constant 18 : index
    %c0_12 = arith.constant 0 : index
    %11 = tpu.strided_load %arg0[%c18, %c0_12] {strides = array<i32: 2, 1>} : memref<32x8xf32, #tpu.memory_space<vmem>>, vector<6x8xf32>
    %c19 = arith.constant 19 : index
    %c0_13 = arith.constant 0 : index
    %12 = tpu.strided_load %arg0[%c19, %c0_13] {strides = array<i32: 2, 1>} : memref<32x8xf32, #tpu.memory_space<vmem>>, vector<6x8xf32>
    %c20 = arith.constant 20 : index
    %c0_14 = arith.constant 0 : index
    %13 = tpu.strided_load %arg0[%c20, %c0_14] {strides = array<i32: 2, 1>} : memref<32x8xf32, #tpu.memory_space<vmem>>, vector<6x8xf32>
    %c21 = arith.constant 21 : index
    %c0_15 = arith.constant 0 : index
    %14 = tpu.strided_load %arg0[%c21, %c0_15] {strides = array<i32: 2, 1>} : memref<32x8xf32, #tpu.memory_space<vmem>>, vector<6x8xf32>
    %15 = tpu.concatenate %9, %10, %11, %12, %13, %14 in 1 : vector<6x8xf32>, vector<6x8xf32>, vector<6x8xf32>, vector<6x8xf32>, vector<6x8xf32>, vector<6x8xf32> -> vector<6x48xf32>
    %16 = tpu.concatenate %8, %15 in 0 : vector<6x48xf32>, vector<6x48xf32> -> vector<12x48xf32>
    %17 = vector.extract_strided_slice %0 {offsets = [0, 0], sizes = [48, 48], strides = [1, 1]} : vector<48x112xf32> to vector<48x48xf32>
    %18 = vector.extract_strided_slice %0 {offsets = [0, 48], sizes = [48, 48], strides = [1, 1]} : vector<48x112xf32> to vector<48x48xf32>
    %19 = vector.extract_strided_slice %0 {offsets = [0, 96], sizes = [48, 16], strides = [1, 1]} : vector<48x112xf32> to vector<48x16xf32>
    %cst = arith.constant dense<0.000000e+00> : vector<12x48xf32>
    %20 = tpu.matmul %16, %17, %cst {dimension_numbers = #tpu.dot_dimension_numbers<[1], [0], [0], [1], [0, 0, 1, 1], [], []>} : vector<12x48xf32>, vector<48x48xf32>, vector<12x48xf32> -> vector<12x48xf32>
    %cst_16 = arith.constant dense<0.000000e+00> : vector<12x48xf32>
    %21 = tpu.matmul %16, %18, %cst_16 {dimension_numbers = #tpu.dot_dimension_numbers<[1], [0], [0], [1], [0, 0, 1, 1], [], []>} : vector<12x48xf32>, vector<48x48xf32>, vector<12x48xf32> -> vector<12x48xf32>
    %22 = arith.maximumf %20, %21 : vector<12x48xf32>
    %23 = vector.extract_strided_slice %1 {offsets = [0, 0], sizes = [1, 48], strides = [1, 1]} : vector<1x64xf32> to vector<1x48xf32>
    %24 = vector.broadcast %23 : vector<1x48xf32> to vector<12x48xf32>
    %25 = arith.addf %22, %24 : vector<12x48xf32>
    %cst_17 = arith.constant 0.000000e+00 : f32
    %26 = vector.broadcast %cst_17 : f32 to vector<12x48xf32>
    %27 = arith.maximumf %25, %26 : vector<12x48xf32>
    %cst_18 = arith.constant dense<0.000000e+00> : vector<12x16xf32>
    %28 = tpu.matmul %27, %19, %cst_18 {dimension_numbers = #tpu.dot_dimension_numbers<[1], [0], [0], [1], [0, 0, 1, 1], [], []>} : vector<12x48xf32>, vector<48x16xf32>, vector<12x16xf32> -> vector<12x16xf32>
    %29 = vector.extract_strided_slice %1 {offsets = [0, 48], sizes = [1, 16], strides = [1, 1]} : vector<1x64xf32> to vector<1x16xf32>
    %30 = vector.broadcast %29 : vector<1x16xf32> to vector<12x16xf32>
    %31 = arith.addf %28, %30 : vector<12x16xf32>
    %c0_19 = arith.constant 0 : index
    %c0_20 = arith.constant 0 : index
    %32 = vector.load %arg3[%c0_19, %c0_20] : memref<12x16xf32, #tpu.memory_space<vmem>>, vector<12x16xf32>
    tpu.vector_store %arg3[%c0_19, %c0_20], %31 {strides = array<i32>} : memref<12x16xf32, #tpu.memory_space<vmem>>, vector<12x16xf32>,
    return
  }
}

</mosaic_0001>

<llo_original>
// kernel: multi_channel_cnn.1
$region0: #{multi_channel_cnn.1}
  #allocation0 [shape = 'u32[]', space=smem, size = 0x4, offset = 0x4, fixed_abs, tag = 'smem constant byte address 0x4 - core index']
  #allocation1 [shape = 'u32[72,128]{1,0:T(1,128)}', space=vmem, size = 0x9000, scoped, tag = 'internal scratch']
  %s0 = inlined_call_operand.vmem [shape: f32[32,8], index: 0, kind: input, shape index: {}]
  %s1 = inlined_call_operand.vmem [shape: f32[48,112], index: 1, kind: input, shape index: {}]
  %s2 = inlined_call_operand.vmem [shape: f32[1,64], index: 2, kind: input, shape index: {}]
  %s3 = inlined_call_operand.vmem [shape: f32[12,16], index: 3, kind: output, shape index: {}]
  %s4 = sld [smem:[#allocation0]]
  $region22: #{multi_channel_cnn.1} parent=0
    _
  %s6 = ssub.s32 1, %s4
  %s7 = scalar_select 0, %s6, %s4
  // Predicated region
  $region2: #{multi_channel_cnn.1} parent=0 // pred_check
    _
  $region3: #{multi_channel_cnn.1} parent=0 // pred_check_branch
    %9 = sbr.rel (0) target = $region5
  $region4: #{multi_channel_cnn.1} parent=0 // pred_region
    _
  $region5: #{multi_channel_cnn.1} parent=0 // pred_fallthru
    _
  // Predicated region
  $region6: #{multi_channel_cnn.1} parent=0 // pred_check
    _
  $region7: #{multi_channel_cnn.1} parent=0 // pred_check_branch
    %11 = sbr.rel (0) target = $region9
  $region8: #{multi_channel_cnn.1} parent=0 // pred_region
    _
  $region9: #{multi_channel_cnn.1} parent=0 // pred_fallthru
    _
  // Predicated region
  $region10: #{multi_channel_cnn.1} parent=0 // pred_check
    _
  $region11: #{multi_channel_cnn.1} parent=0 // pred_check_branch
    %13 = sbr.rel (0) target = $region13
  $region12: #{multi_channel_cnn.1} parent=0 // pred_region
    _
  $region13: #{multi_channel_cnn.1} parent=0 // pred_fallthru
    _
  %v14 = vld [vmem:[%s1] sm:$0xff]
  %v15 = vld [vmem:[%s1 + $0x8] sm:$0xff]
  %v16 = vld [vmem:[%s1 + $0x10] sm:$0xff]
  %v17 = vld [vmem:[%s1 + $0x18] sm:$0xff]
  %v18 = vld [vmem:[%s1 + $0x20] sm:$0xff]
  %v19 = vld [vmem:[%s1 + $0x28] sm:$0xff]
  %v20 = vld [vmem:[%s2] sm:$0x1]
  %v21 = vld [vmem:[%s0] ss:$2 sm:$0x3f]
  %s22 = scalar_lea.vmem %s0, 1
  %v23 = vld [vmem:[%s22] ss:$2 sm:$0x3f]
  %s24 = scalar_lea.vmem %s0, 2
  %v25 = vld [vmem:[%s24] ss:$2 sm:$0x3f]
  %s26 = scalar_lea.vmem %s0, 3
  %v27 = vld [vmem:[%s26] ss:$2 sm:$0x3f]
  %s28 = scalar_lea.vmem %s0, 4
  %v29 = vld [vmem:[%s28] ss:$2 sm:$0x3f]
  %s30 = scalar_lea.vmem %s0, 5
  %v31 = vld [vmem:[%s30] ss:$2 sm:$0x3f]
  %33 = vrot.lane.b32.xlu0 %v23, 8
  %v34 = vpop.permute.xlu0 %33
  %37 = vrot.lane.b32.xlu0 %v25, 16
  %v38 = vpop.permute.xlu0 %37
  %41 = vrot.lane.b32.xlu0 %v27, 24
  %v42 = vpop.permute.xlu0 %41
  %45 = vrot.lane.b32.xlu0 %v29, 32
  %v46 = vpop.permute.xlu0 %45
  %49 = vrot.lane.b32.xlu0 %v31, 40
  %v50 = vpop.permute.xlu0 %49
  %vm52 = vcmask 64512
  %v53 = vsel %vm52, %v21, %v34
  %vm54 = vcmask 130048
  %v55 = vsel %vm54, %v53, %v38
  %vm56 = vcmask 195584
  %v57 = vsel %vm56, %v55, %v42
  %vm58 = vcmask 261120
  %v59 = vsel %vm58, %v57, %v46
  %vm60 = vcmask 326656
  %v61 = vsel %vm60, %v59, %v50
  %s62 = scalar_lea.vmem %s0, 16
  %v63 = vld [vmem:[%s62] ss:$2 sm:$0x3f]
  %s64 = scalar_lea.vmem %s0, 17
  %v65 = vld [vmem:[%s64] ss:$2 sm:$0x3f]
  %s66 = scalar_lea.vmem %s0, 18
  %v67 = vld [vmem:[%s66] ss:$2 sm:$0x3f]
  %s68 = scalar_lea.vmem %s0, 19
  %v69 = vld [vmem:[%s68] ss:$2 sm:$0x3f]
  %s70 = scalar_lea.vmem %s0, 20
  %v71 = vld [vmem:[%s70] ss:$2 sm:$0x3f]
  %s72 = scalar_lea.vmem %s0, 21
  %v73 = vld [vmem:[%s72] ss:$2 sm:$0x3f]
  %75 = vrot.lane.b32.xlu0 %v65, 8
  %v76 = vpop.permute.xlu0 %75
  %79 = vrot.lane.b32.xlu0 %v67, 16
  %v80 = vpop.permute.xlu0 %79
  %83 = vrot.lane.b32.xlu0 %v69, 24
  %v84 = vpop.permute.xlu0 %83
  %87 = vrot.lane.b32.xlu0 %v71, 32
  %v88 = vpop.permute.xlu0 %87
  %91 = vrot.lane.b32.xlu0 %v73, 40
  %v92 = vpop.permute.xlu0 %91
  %v94 = vsel %vm52, %v63, %v76
  %v95 = vsel %vm54, %v94, %v80
  %v96 = vsel %vm56, %v95, %v84
  %v97 = vsel %vm58, %v96, %v88
  %v98 = vsel %vm60, %v97, %v92
  %v100 = vrot.slane %v98, 2
  %vm102 = vcmask 1045504
  %v103 = vsel %vm102, %v61, %v100
  %vm104 = vcmask 392192
  %v106 = vsel %vm104, %v103, 0
  %v108 = vsel %vm104, %v100, 0
  %110 = vmatpush.msra.mxu0 0.0
  %111 = vmatpush.msra.mxu0 0.0
  %112 = vmatpush.msra.mxu0 0.0
  %113 = vmatpush.msra.mxu0 0.0
  %114 = vmatpush.msra.mxu0 0.0
  %115 = vmatpush.msra.mxu0 0.0
  %116 = vmatpush.msra.mxu0 0.0
  %117 = vmatpush.msra.mxu0 0.0
  %118 = vmatpush.msra.mxu0 0.0
  %119 = vmatpush.msra.mxu0 0.0
  %120 = vmatpush.msra.mxu0 %v19
  %121 = vmatpush.msra.mxu0 %v18
  %122 = vmatpush.msra.mxu0 %v17
  %123 = vmatpush.msra.mxu0 %v16
  %124 = vmatpush.msra.mxu0 %v15
  %125 = vmatpush.msra.mxu0 %v14
  %126 = vmatmul.f32.gmra.mxu0 %v106
  %v127 = vpop.f32.mrf.mxu0
  %v128 = vadd.f32 0.0, %v127
  %129 = vmatmul.f32.gmra.mxu0 %v108
  %v130 = vpop.f32.mrf.mxu0
  %v131 = vadd.f32 0.0, %v130
  %132 = vdwg.mxu0
  %139 = vrot.lane.b32.xlu0 %v14, 80
  %v140 = vpop.permute.xlu0 %139
  %141 = vrot.lane.b32.xlu0 %v15, 80
  %v142 = vpop.permute.xlu0 %141
  %143 = vrot.lane.b32.xlu0 %v16, 80
  %v144 = vpop.permute.xlu0 %143
  %145 = vrot.lane.b32.xlu0 %v17, 80
  %v146 = vpop.permute.xlu0 %145
  %147 = vrot.lane.b32.xlu0 %v18, 80
  %v148 = vpop.permute.xlu0 %147
  %149 = vrot.lane.b32.xlu0 %v19, 80
  %v150 = vpop.permute.xlu0 %149
  %157 = vmatpush.msra.mxu0 0.0
  %158 = vmatpush.msra.mxu0 0.0
  %159 = vmatpush.msra.mxu0 0.0
  %160 = vmatpush.msra.mxu0 0.0
  %161 = vmatpush.msra.mxu0 0.0
  %162 = vmatpush.msra.mxu0 0.0
  %163 = vmatpush.msra.mxu0 0.0
  %164 = vmatpush.msra.mxu0 0.0
  %165 = vmatpush.msra.mxu0 0.0
  %166 = vmatpush.msra.mxu0 0.0
  %167 = vmatpush.msra.mxu0 %v150
  %168 = vmatpush.msra.mxu0 %v148
  %169 = vmatpush.msra.mxu0 %v146
  %170 = vmatpush.msra.mxu0 %v144
  %171 = vmatpush.msra.mxu0 %v142
  %172 = vmatpush.msra.mxu0 %v140
  %173 = vmatmul.f32.gmra.mxu0 %v106
  %v174 = vpop.f32.mrf.mxu0
  %v175 = vadd.f32 0.0, %v174
  %176 = vmatmul.f32.gmra.mxu0 %v108
  %v177 = vpop.f32.mrf.mxu0
  %v178 = vadd.f32 0.0, %v177
  %179 = vdwg.mxu0
  %v180 = vmax.f32 %v128, %v175
  %v181 = vmax.f32 %v131, %v178
  %v183 = vperm.slane %v20, 0
  %v185 = vadd.f32 %v180, %v183
  %v186 = vadd.f32 %v181, %v183
  %v187 = vmax.f32 %v185, 0.0
  %v188 = vmax.f32 %v186, 0.0
  %189 = vrot.lane.b32.xlu0 %v14, 32
  %v190 = vpop.permute.xlu0 %189
  %191 = vrot.lane.b32.xlu0 %v15, 32
  %v192 = vpop.permute.xlu0 %191
  %193 = vrot.lane.b32.xlu0 %v16, 32
  %v194 = vpop.permute.xlu0 %193
  %195 = vrot.lane.b32.xlu0 %v17, 32
  %v196 = vpop.permute.xlu0 %195
  %197 = vrot.lane.b32.xlu0 %v18, 32
  %v198 = vpop.permute.xlu0 %197
  %199 = vrot.lane.b32.xlu0 %v19, 32
  %v200 = vpop.permute.xlu0 %199
  %207 = vrot.lane.b32.xlu0 %v183, 80
  %v208 = vpop.permute.xlu0 %207
  %v211 = vsel %vm104, %v187, 0
  %v214 = vsel %vm104, %v188, 0
  %216 = vmatpush.msra.mxu0 0.0
  %217 = vmatpush.msra.mxu0 0.0
  %218 = vmatpush.msra.mxu0 0.0
  %219 = vmatpush.msra.mxu0 0.0
  %220 = vmatpush.msra.mxu0 0.0
  %221 = vmatpush.msra.mxu0 0.0
  %222 = vmatpush.msra.mxu0 0.0
  %223 = vmatpush.msra.mxu0 0.0
  %224 = vmatpush.msra.mxu0 0.0
  %225 = vmatpush.msra.mxu0 0.0
  %226 = vmatpush.msra.mxu0 %v200
  %227 = vmatpush.msra.mxu0 %v198
  %228 = vmatpush.msra.mxu0 %v196
  %229 = vmatpush.msra.mxu0 %v194
  %230 = vmatpush.msra.mxu0 %v192
  %231 = vmatpush.msra.mxu0 %v190
  %232 = vmatmul.f32.gmra.mxu0 %v211
  %v233 = vpop.f32.mrf.mxu0
  %v234 = vadd.f32 %v208, %v233
  %235 = vmatmul.f32.gmra.mxu0 %v214
  %v236 = vpop.f32.mrf.mxu0
  %v237 = vadd.f32 %v208, %v236
  %238 = vdwg.mxu0
  %239 = vst.msk [vmem:[%s3] sm:$0xff] %vm54, %v234
  %vm240 = vcmask 125952
  %241 = vst.msk [vmem:[%s3 + $0x8] sm:$0xf] %vm240, %v237
  // Predicated region
  $region14: #{multi_channel_cnn.1} parent=0 // pred_check
    _
  $region15: #{multi_channel_cnn.1} parent=0 // pred_check_branch
    %243 = sbr.rel (0) target = $region17
  $region16: #{multi_channel_cnn.1} parent=0 // pred_region
    _
  $region17: #{multi_channel_cnn.1} parent=0 // pred_fallthru
    _
  // Predicated region
  $region18: #{multi_channel_cnn.1} parent=0 // pred_check
    _
  $region19: #{multi_channel_cnn.1} parent=0 // pred_check_branch
    %245 = sbr.rel (0) target = $region21
  $region20: #{multi_channel_cnn.1} parent=0 // pred_region
    _
  $region21: #{multi_channel_cnn.1} parent=0 // pred_fallthru
    _

</llo_original>
